<compile_context>
chip_gen: v7x
topology: tpu7x:2x2x1
jax: 0.10.0
libtpu: 0.0.40
codegen_flags: <defaults>
</compile_context>

<pallas_src>
import jax
import jax.numpy as jnp
from jax.experimental import pallas as pl
from jax.experimental.pallas import tpu as pltpu


# ---------------------------------------------------------------------------
# Kernel
# ---------------------------------------------------------------------------
def _make_kernel(tm, n_freq_pad, m_valid, n_i):
    """tm: rows (frames) per tile, n_freq_pad: lane-padded #freqs,
    m_valid: number of real (non-padded) frame rows, n_i: inner grid extent."""

    def kernel(xy_ref, basis_ref, sqd_ref, sqy_ref, lad_ref):
        p = pl.program_id(0)          # "parallel" slice (megacore on v7x)
        i = pl.program_id(1)          # "arbitrary" reduction axis

        @pl.when(i == 0)
        def _():
            sqd_ref[...] = jnp.zeros_like(sqd_ref)
            sqy_ref[...] = jnp.zeros_like(sqy_ref)
            lad_ref[...] = jnp.zeros_like(lad_ref)

        basis = basis_ref[...]                      # (n_fft, 2*Fp) bf16, windowed
        x_f = xy_ref[0]                             # (tm, n_fft) bf16
        y_f = xy_ref[1]

        # STFT as MXU matmuls; real part in lanes [0,Fp), imag in [Fp,2Fp).
        zx = jnp.dot(x_f, basis, preferred_element_type=jnp.float32)
        zy = jnp.dot(y_f, basis, preferred_element_type=jnp.float32)

        xr, xi = zx[:, :n_freq_pad], zx[:, n_freq_pad:]
        yr, yi = zy[:, :n_freq_pad], zy[:, n_freq_pad:]

        x_mag = jnp.sqrt(jnp.maximum(xr * xr + xi * xi, 1e-7))
        y_mag = jnp.sqrt(jnp.maximum(yr * yr + yi * yi, 1e-7))

        # Padded rows (zero frames) and padded lanes (zero basis columns) give
        # x_mag == y_mag == sqrt(1e-7), so they contribute exactly 0 here.
        d = y_mag - x_mag
        sqd_ref[...] += jnp.sum(d * d, axis=0, keepdims=True)
        lad_ref[...] += jnp.sum(jnp.abs(jnp.log(x_mag / y_mag)),
                                axis=0, keepdims=True)

        # ||y||^2 does need the row mask, but only on tiles with padded rows.
        row0 = (p * n_i + i) * tm

        @pl.when(row0 + tm <= m_valid)
        def _():
            sqy_ref[...] += jnp.sum(y_mag * y_mag, axis=0, keepdims=True)

        @pl.when(row0 + tm > m_valid)
        def _():
            rows = row0 + jax.lax.broadcasted_iota(jnp.int32, y_mag.shape, 0)
            ym = jnp.where(rows < m_valid, y_mag, 0.0)
            sqy_ref[...] += jnp.sum(ym * ym, axis=0, keepdims=True)

    return kernel


# ---------------------------------------------------------------------------
# Host-side helpers (framing + windowed DFT basis)
# ---------------------------------------------------------------------------
def _frame(sig, fft_size, hop):
    """torch.stft(center=True, pad_mode='reflect') framing."""
    B = sig.shape[0]
    pad = fft_size // 2
    sig_p = jnp.pad(sig, ((0, 0), (pad, pad)), mode="reflect")
    n_frames = 1 + (sig_p.shape[1] - fft_size) // hop
    idx = jnp.arange(n_frames)[:, None] * hop + jnp.arange(fft_size)[None, :]
    frames = sig_p[:, idx]                       # (B, n_frames, n_fft)
    return frames.reshape(B * n_frames, fft_size), n_frames


def _hann_window(fft_size, win_length):
    # torch.hann_window default (periodic=True), centered inside n_fft.
    n = jnp.arange(win_length, dtype=jnp.float32)
    win = 0.5 - 0.5 * jnp.cos(2.0 * jnp.pi * n / win_length)
    lpad = (fft_size - win_length) // 2
    return jnp.pad(win, (lpad, fft_size - win_length - lpad))    # (n_fft,)


def _windowed_dft_basis(fft_size, win_length, n_freq_pad):
    """Hann window folded into the one-sided DFT basis; freq axis zero-padded
    to a multiple of 128; real/imag halves concatenated along lanes."""
    n_freq = fft_size // 2 + 1
    win = _hann_window(fft_size, win_length)
    nn = jnp.arange(fft_size, dtype=jnp.float32)[:, None]
    kk = jnp.arange(n_freq, dtype=jnp.float32)[None, :]
    ang = 2.0 * jnp.pi * nn * kk / fft_size
    br = win[:, None] * jnp.cos(ang)             # (n_fft, n_freq)
    bi = win[:, None] * (-jnp.sin(ang))
    padc = n_freq_pad - n_freq
    br = jnp.pad(br, ((0, 0), (0, padc)))
    bi = jnp.pad(bi, ((0, 0), (0, padc)))
    return jnp.concatenate([br, bi], axis=1)     # (n_fft, 2*n_freq_pad)


# ---------------------------------------------------------------------------
# Public entry point
# ---------------------------------------------------------------------------
def stft_loss(x, y, fft_size, shift_length, win_length, *,
              tm_max=256, n_par=2, compute_dtype=jnp.bfloat16):
    B = x.shape[0]
    n_freq = fft_size // 2 + 1
    n_freq_pad = ((n_freq + 127) // 128) * 128

    basis = _windowed_dft_basis(fft_size, win_length,
                                n_freq_pad).astype(compute_dtype)

    xf, n_frames = _frame(x, fft_size, shift_length)
    yf, _ = _frame(y, fft_size, shift_length)
    m_valid = B * n_frames

    # Row tile: as large as allowed (better MXU fill), multiple of 16 (bf16
    # sublane packing), capped so tiny inputs don't explode padded work.
    tm_max = max(16, (tm_max // 16) * 16)
    tm = max(16, min(tm_max, ((m_valid + 15) // 16) * 16))
    n_tiles = -(-m_valid // tm)
    n_tiles = ((n_tiles + n_par - 1) // n_par) * n_par
    n_i = n_tiles // n_par
    m_pad = n_tiles * tm

    # Stack x/y frames -> one (2, M, n_fft) bf16 input; zero-pad rows.
    xy = jnp.stack([xf, yf]).astype(compute_dtype)
    xy = jnp.pad(xy, ((0, 0), (0, m_pad - m_valid), (0, 0)))

    acc_shape = jax.ShapeDtypeStruct((n_par, 1, n_freq_pad), jnp.float32)
    acc_spec = pl.BlockSpec((None, 1, n_freq_pad), lambda p, i: (p, 0, 0))

    sqd, sqy, lad = pl.pallas_call(
        _make_kernel(tm, n_freq_pad, m_valid, n_i),
        out_shape=[acc_shape, acc_shape, acc_shape],
        grid_spec=pltpu.PrefetchScalarGridSpec(
            num_scalar_prefetch=0,
            grid=(n_par, n_i),
            in_specs=[
                pl.BlockSpec((2, tm, fft_size),
                             lambda p, i: (0, p * n_i + i, 0)),
                pl.BlockSpec((fft_size, 2 * n_freq_pad),
                             lambda p, i: (0, 0)),
            ],
            out_specs=[acc_spec, acc_spec, acc_spec],
        ),
        compiler_params=pltpu.CompilerParams(
            dimension_semantics=("parallel", "arbitrary"),
            vmem_limit_bytes=64 * 1024 * 1024),
    )(xy, basis)

    # Tiny epilogue: drop padded lanes, combine per-core/per-lane partials.
    sqd_t = jnp.sum(sqd[..., :n_freq])
    sqy_t = jnp.sum(sqy[..., :n_freq])
    lad_t = jnp.sum(lad[..., :n_freq])

    spectral_convergence_loss = jnp.sqrt(sqd_t) / jnp.sqrt(sqy_t)
    magnitude_loss = lad_t / (m_valid * n_freq)
    return spectral_convergence_loss, magnitude_loss


# ---------------------------------------------------------------------------
# Pure-JAX float32 reference (same math, no Pallas) for validation
# ---------------------------------------------------------------------------
def _ref_stft_loss(x, y, fft_size, shift_length, win_length):
    n_freq = fft_size // 2 + 1
    win = _hann_window(fft_size, win_length)
    nn = jnp.arange(fft_size, dtype=jnp.float32)[:, None]
    kk = jnp.arange(n_freq, dtype=jnp.float32)[None, :]
    ang = 2.0 * jnp.pi * nn * kk / fft_size
    cosb, sinb = jnp.cos(ang), -jnp.sin(ang)

    def mag(sig):
        f, _ = _frame(sig, fft_size, shift_length)
        fw = f * win[None, :]
        r = fw @ cosb
        i = fw @ sinb
        return jnp.sqrt(jnp.maximum(r * r + i * i, 1e-7))

    xm, ym = mag(x), mag(y)
    sc = jnp.linalg.norm(ym - xm) / jnp.linalg.norm(ym)
    ml = jnp.mean(jnp.abs(jnp.log(xm) - jnp.log(ym)))
    return sc, ml


if __name__ == "__main__":
    key = jax.random.PRNGKey(0)
    kx, ky = jax.random.split(key)

    B, T = 2, 256
    fft_size, shift_length, win_length = 64, 16, 64

    x = jax.random.normal(kx, (B, T), dtype=jnp.float32)
    y = jax.random.normal(ky, (B, T), dtype=jnp.float32)

    sc, mag = stft_loss(x, y, fft_size, shift_length, win_length)
    sc, mag = jax.block_until_ready((sc, mag))

    sc_r, mag_r = _ref_stft_loss(x, y, fft_size, shift_length, win_length)
    # 5e-3 tolerance: kernel feeds the MXU bfloat16 frames/bases (f32 accum),
    # reference is full float32.
    assert abs(float(sc) - float(sc_r)) < 5e-3, (float(sc), float(sc_r))
    assert abs(float(mag) - float(mag_r)) < 5e-3, (float(mag), float(mag_r))

    print("KERNEL_OK")
</pallas_src>

<mosaic_0001>
module attributes {stable_mosaic.version = 11 : i64} {
  func.func @kernel(%arg0: i32, %arg1: i32, %arg2: memref<2x48x64xbf16, #tpu.memory_space<vmem>>, %arg3: memref<64x256xbf16, #tpu.memory_space<vmem>>, %arg4: memref<1x1x128xf32, #tpu.memory_space<vmem>>, %arg5: memref<1x1x128xf32, #tpu.memory_space<vmem>>, %arg6: memref<1x1x128xf32, #tpu.memory_space<vmem>>) attributes {dimension_semantics = [#tpu.dimension_semantics<parallel>, #tpu.dimension_semantics<arbitrary>], iteration_bounds = array<i64: 2, 1>, scalar_prefetch = 0 : i64, scratch_operands = 0 : i64, tpu.core_type = #tpu.core_type<tc>, window_params = [{transform_indices = @transform_0, window_bounds = array<i64: 2, 48, 64>}, {pipeline_mode = #tpu.pipeline_mode<synchronous>, transform_indices = @transform_1, window_bounds = array<i64: 64, 256>}, {transform_indices = @transform_2, window_bounds = array<i64: 1, 1, 128>}, {transform_indices = @transform_3, window_bounds = array<i64: 1, 1, 128>}, {transform_indices = @transform_4, window_bounds = array<i64: 1, 1, 128>}]} {
    %c0_i32 = arith.constant 0 : i32
    %0 = arith.cmpi eq, %arg1, %c0_i32 : i32
    %1 = arith.extui %0 : i1 to i32
    %c0_i32_0 = arith.constant 0 : i32
    %2 = arith.cmpi ne, %1, %c0_i32_0 : i32
    scf.if %2 {
      %cst_29 = arith.constant 0.000000e+00 : f32
      %58 = vector.broadcast %cst_29 : f32 to vector<1x128xf32>
      %c0_30 = arith.constant 0 : index
      %c0_31 = arith.constant 0 : index
      %c0_32 = arith.constant 0 : index
      %59 = vector.load %arg4[%c0_30, %c0_31, %c0_32] : memref<1x1x128xf32, #tpu.memory_space<vmem>>, vector<1x1x128xf32>
      %60 = vector.shape_cast %59 : vector<1x1x128xf32> to vector<1x128xf32>
      %61 = vector.shape_cast %58 : vector<1x128xf32> to vector<1x1x128xf32>
      tpu.vector_store %arg4[%c0_30, %c0_31, %c0_32], %61 {strides = array<i32>} : memref<1x1x128xf32, #tpu.memory_space<vmem>>, vector<1x1x128xf32>,
      %cst_33 = arith.constant 0.000000e+00 : f32
      %62 = vector.broadcast %cst_33 : f32 to vector<1x128xf32>
      %c0_34 = arith.constant 0 : index
      %c0_35 = arith.constant 0 : index
      %c0_36 = arith.constant 0 : index
      %63 = vector.load %arg5[%c0_34, %c0_35, %c0_36] : memref<1x1x128xf32, #tpu.memory_space<vmem>>, vector<1x1x128xf32>
      %64 = vector.shape_cast %63 : vector<1x1x128xf32> to vector<1x128xf32>
      %65 = vector.shape_cast %62 : vector<1x128xf32> to vector<1x1x128xf32>
      tpu.vector_store %arg5[%c0_34, %c0_35, %c0_36], %65 {strides = array<i32>} : memref<1x1x128xf32, #tpu.memory_space<vmem>>, vector<1x1x128xf32>,
      %cst_37 = arith.constant 0.000000e+00 : f32
      %66 = vector.broadcast %cst_37 : f32 to vector<1x128xf32>
      %c0_38 = arith.constant 0 : index
      %c0_39 = arith.constant 0 : index
      %c0_40 = arith.constant 0 : index
      %67 = vector.load %arg6[%c0_38, %c0_39, %c0_40] : memref<1x1x128xf32, #tpu.memory_space<vmem>>, vector<1x1x128xf32>
      %68 = vector.shape_cast %67 : vector<1x1x128xf32> to vector<1x128xf32>
      %69 = vector.shape_cast %66 : vector<1x128xf32> to vector<1x1x128xf32>
      tpu.vector_store %arg6[%c0_38, %c0_39, %c0_40], %69 {strides = array<i32>} : memref<1x1x128xf32, #tpu.memory_space<vmem>>, vector<1x1x128xf32>,
    } else {
    }
    %c0 = arith.constant 0 : index
    %c0_1 = arith.constant 0 : index
    %3 = vector.load %arg3[%c0, %c0_1] : memref<64x256xbf16, #tpu.memory_space<vmem>>, vector<64x256xbf16>
    %c0_2 = arith.constant 0 : index
    %c0_3 = arith.constant 0 : index
    %c0_4 = arith.constant 0 : index
    %4 = vector.load %arg2[%c0_2, %c0_3, %c0_4] : memref<2x48x64xbf16, #tpu.memory_space<vmem>>, vector<1x48x64xbf16>
    %5 = vector.shape_cast %4 : vector<1x48x64xbf16> to vector<48x64xbf16>
    %c1 = arith.constant 1 : index
    %c0_5 = arith.constant 0 : index
    %c0_6 = arith.constant 0 : index
    %6 = vector.load %arg2[%c1, %c0_5, %c0_6] : memref<2x48x64xbf16, #tpu.memory_space<vmem>>, vector<1x48x64xbf16>
    %7 = vector.shape_cast %6 : vector<1x48x64xbf16> to vector<48x64xbf16>
    %cst = arith.constant dense<0.000000e+00> : vector<48x256xf32>
    %8 = tpu.matmul %5, %3, %cst {dimension_numbers = #tpu.dot_dimension_numbers<[1], [0], [0], [1], [0, 0, 1, 1], [], []>} : vector<48x64xbf16>, vector<64x256xbf16>, vector<48x256xf32> -> vector<48x256xf32>
    %cst_7 = arith.constant dense<0.000000e+00> : vector<48x256xf32>
    %9 = tpu.matmul %7, %3, %cst_7 {dimension_numbers = #tpu.dot_dimension_numbers<[1], [0], [0], [1], [0, 0, 1, 1], [], []>} : vector<48x64xbf16>, vector<64x256xbf16>, vector<48x256xf32> -> vector<48x256xf32>
    %10 = vector.extract_strided_slice %8 {offsets = [0, 0], sizes = [48, 128], strides = [1, 1]} : vector<48x256xf32> to vector<48x128xf32>
    %11 = vector.extract_strided_slice %8 {offsets = [0, 128], sizes = [48, 128], strides = [1, 1]} : vector<48x256xf32> to vector<48x128xf32>
    %12 = vector.extract_strided_slice %9 {offsets = [0, 0], sizes = [48, 128], strides = [1, 1]} : vector<48x256xf32> to vector<48x128xf32>
    %13 = vector.extract_strided_slice %9 {offsets = [0, 128], sizes = [48, 128], strides = [1, 1]} : vector<48x256xf32> to vector<48x128xf32>
    %14 = arith.mulf %10, %10 : vector<48x128xf32>
    %15 = arith.mulf %11, %11 : vector<48x128xf32>
    %16 = arith.addf %14, %15 : vector<48x128xf32>
    %cst_8 = arith.constant 1.000000e-07 : f32
    %17 = vector.broadcast %cst_8 : f32 to vector<48x128xf32>
    %18 = arith.maximumf %16, %17 : vector<48x128xf32>
    %19 = math.sqrt %18 : vector<48x128xf32>
    %20 = arith.mulf %12, %12 : vector<48x128xf32>
    %21 = arith.mulf %13, %13 : vector<48x128xf32>
    %22 = arith.addf %20, %21 : vector<48x128xf32>
    %cst_9 = arith.constant 1.000000e-07 : f32
    %23 = vector.broadcast %cst_9 : f32 to vector<48x128xf32>
    %24 = arith.maximumf %22, %23 : vector<48x128xf32>
    %25 = math.sqrt %24 : vector<48x128xf32>
    %26 = arith.subf %25, %19 : vector<48x128xf32>
    %c0_10 = arith.constant 0 : index
    %c0_11 = arith.constant 0 : index
    %c0_12 = arith.constant 0 : index
    %27 = vector.load %arg4[%c0_10, %c0_11, %c0_12] : memref<1x1x128xf32, #tpu.memory_space<vmem>>, vector<1x1x128xf32>
    %28 = vector.shape_cast %27 : vector<1x1x128xf32> to vector<1x128xf32>
    %29 = arith.mulf %26, %26 : vector<48x128xf32>
    %cst_13 = arith.constant dense<0.000000e+00> : vector<128xf32>
    %30 = vector.multi_reduction <add>, %29, %cst_13 [0] : vector<48x128xf32> to vector<128xf32>
    %31 = vector.shape_cast %30 : vector<128xf32> to vector<1x128xf32>
    %32 = arith.addf %28, %31 : vector<1x128xf32>
    %c0_14 = arith.constant 0 : index
    %c0_15 = arith.constant 0 : index
    %c0_16 = arith.constant 0 : index
    %33 = vector.load %arg4[%c0_14, %c0_15, %c0_16] : memref<1x1x128xf32, #tpu.memory_space<vmem>>, vector<1x1x128xf32>
    %34 = vector.shape_cast %33 : vector<1x1x128xf32> to vector<1x128xf32>
    %35 = vector.shape_cast %32 : vector<1x128xf32> to vector<1x1x128xf32>
    tpu.vector_store %arg4[%c0_14, %c0_15, %c0_16], %35 {strides = array<i32>} : memref<1x1x128xf32, #tpu.memory_space<vmem>>, vector<1x1x128xf32>,
    %c0_17 = arith.constant 0 : index
    %c0_18 = arith.constant 0 : index
    %c0_19 = arith.constant 0 : index
    %36 = vector.load %arg6[%c0_17, %c0_18, %c0_19] : memref<1x1x128xf32, #tpu.memory_space<vmem>>, vector<1x1x128xf32>
    %37 = vector.shape_cast %36 : vector<1x1x128xf32> to vector<1x128xf32>
    %38 = arith.divf %19, %25 : vector<48x128xf32>
    %39 = math.log %38 : vector<48x128xf32>
    %40 = math.absf %39 : vector<48x128xf32>
    %cst_20 = arith.constant dense<0.000000e+00> : vector<128xf32>
    %41 = vector.multi_reduction <add>, %40, %cst_20 [0] : vector<48x128xf32> to vector<128xf32>
    %42 = vector.shape_cast %41 : vector<128xf32> to vector<1x128xf32>
    %43 = arith.addf %37, %42 : vector<1x128xf32>
    %c0_21 = arith.constant 0 : index
    %c0_22 = arith.constant 0 : index
    %c0_23 = arith.constant 0 : index
    %44 = vector.load %arg6[%c0_21, %c0_22, %c0_23] : memref<1x1x128xf32, #tpu.memory_space<vmem>>, vector<1x1x128xf32>
    %45 = vector.shape_cast %44 : vector<1x1x128xf32> to vector<1x128xf32>
    %46 = vector.shape_cast %43 : vector<1x128xf32> to vector<1x1x128xf32>
    tpu.vector_store %arg6[%c0_21, %c0_22, %c0_23], %46 {strides = array<i32>} : memref<1x1x128xf32, #tpu.memory_space<vmem>>, vector<1x1x128xf32>,
    %c1_i32 = arith.constant 1 : i32
    %47 = arith.muli %arg0, %c1_i32 : i32
    %48 = arith.addi %47, %arg1 : i32
    %c48_i32 = arith.constant 48 : i32
    %49 = arith.muli %48, %c48_i32 : i32
    %c48_i32_24 = arith.constant 48 : i32
    %50 = arith.addi %49, %c48_i32_24 : i32
    %c34_i32 = arith.constant 34 : i32
    %51 = arith.cmpi sle, %50, %c34_i32 : i32
    %52 = arith.extui %51 : i1 to i32
    %c0_i32_25 = arith.constant 0 : i32
    %53 = arith.cmpi ne, %52, %c0_i32_25 : i32
    scf.if %53 {
      %c0_29 = arith.constant 0 : index
      %c0_30 = arith.constant 0 : index
      %c0_31 = arith.constant 0 : index
      %58 = vector.load %arg5[%c0_29, %c0_30, %c0_31] : memref<1x1x128xf32, #tpu.memory_space<vmem>>, vector<1x1x128xf32>
      %59 = vector.shape_cast %58 : vector<1x1x128xf32> to vector<1x128xf32>
      %60 = arith.mulf %25, %25 : vector<48x128xf32>
      %cst_32 = arith.constant dense<0.000000e+00> : vector<128xf32>
      %61 = vector.multi_reduction <add>, %60, %cst_32 [0] : vector<48x128xf32> to vector<128xf32>
      %62 = vector.shape_cast %61 : vector<128xf32> to vector<1x128xf32>
      %63 = arith.addf %59, %62 : vector<1x128xf32>
      %c0_33 = arith.constant 0 : index
      %c0_34 = arith.constant 0 : index
      %c0_35 = arith.constant 0 : index
      %64 = vector.load %arg5[%c0_33, %c0_34, %c0_35] : memref<1x1x128xf32, #tpu.memory_space<vmem>>, vector<1x1x128xf32>
      %65 = vector.shape_cast %64 : vector<1x1x128xf32> to vector<1x128xf32>
      %66 = vector.shape_cast %63 : vector<1x128xf32> to vector<1x1x128xf32>
      tpu.vector_store %arg5[%c0_33, %c0_34, %c0_35], %66 {strides = array<i32>} : memref<1x1x128xf32, #tpu.memory_space<vmem>>, vector<1x1x128xf32>,
    } else {
    }
    %c48_i32_26 = arith.constant 48 : i32
    %54 = arith.addi %49, %c48_i32_26 : i32
    %c34_i32_27 = arith.constant 34 : i32
    %55 = arith.cmpi sgt, %54, %c34_i32_27 : i32
    %56 = arith.extui %55 : i1 to i32
    %c0_i32_28 = arith.constant 0 : i32
    %57 = arith.cmpi ne, %56, %c0_i32_28 : i32
    scf.if %57 {
      %58 = tpu.iota {dimensions = array<i32: 0>} : vector<48x128xi32>
      %59 = vector.broadcast %49 : i32 to vector<48x128xi32>
      %60 = arith.addi %59, %58 : vector<48x128xi32>
      %c34_i32_29 = arith.constant 34 : i32
      %61 = vector.broadcast %c34_i32_29 : i32 to vector<48x128xi32>
      %62 = arith.cmpi slt, %60, %61 : vector<48x128xi32>
      %cst_30 = arith.constant 0.000000e+00 : f32
      %63 = vector.broadcast %cst_30 : f32 to vector<48x128xf32>
      %64 = arith.select %62, %25, %63 : vector<48x128xi1>, vector<48x128xf32>
      %c0_31 = arith.constant 0 : index
      %c0_32 = arith.constant 0 : index
      %c0_33 = arith.constant 0 : index
      %65 = vector.load %arg5[%c0_31, %c0_32, %c0_33] : memref<1x1x128xf32, #tpu.memory_space<vmem>>, vector<1x1x128xf32>
      %66 = vector.shape_cast %65 : vector<1x1x128xf32> to vector<1x128xf32>
      %67 = arith.mulf %64, %64 : vector<48x128xf32>
      %cst_34 = arith.constant dense<0.000000e+00> : vector<128xf32>
      %68 = vector.multi_reduction <add>, %67, %cst_34 [0] : vector<48x128xf32> to vector<128xf32>
      %69 = vector.shape_cast %68 : vector<128xf32> to vector<1x128xf32>
      %70 = arith.addf %66, %69 : vector<1x128xf32>
      %c0_35 = arith.constant 0 : index
      %c0_36 = arith.constant 0 : index
      %c0_37 = arith.constant 0 : index
      %71 = vector.load %arg5[%c0_35, %c0_36, %c0_37] : memref<1x1x128xf32, #tpu.memory_space<vmem>>, vector<1x1x128xf32>
      %72 = vector.shape_cast %71 : vector<1x1x128xf32> to vector<1x128xf32>
      %73 = vector.shape_cast %70 : vector<1x128xf32> to vector<1x1x128xf32>
      tpu.vector_store %arg5[%c0_35, %c0_36, %c0_37], %73 {strides = array<i32>} : memref<1x1x128xf32, #tpu.memory_space<vmem>>, vector<1x1x128xf32>,
    } else {
    }
    return
  }
  func.func @transform_0(%arg0: i32, %arg1: i32) -> (i32, i32, i32) {
    %c1_i32 = arith.constant 1 : i32
    %0 = arith.muli %arg0, %c1_i32 : i32
    %1 = arith.addi %0, %arg1 : i32
    %c0_i32 = arith.constant 0 : i32
    %c0_i32_0 = arith.constant 0 : i32
    %c0_i32_1 = arith.constant 0 : i32
    return %c0_i32, %1, %c0_i32_0 : i32, i32, i32
  }
  func.func @transform_1(%arg0: i32, %arg1: i32) -> (i32, i32) {
    %c0_i32 = arith.constant 0 : i32
    %c0_i32_0 = arith.constant 0 : i32
    %c0_i32_1 = arith.constant 0 : i32
    return %c0_i32, %c0_i32_0 : i32, i32
  }
  func.func @transform_2(%arg0: i32, %arg1: i32) -> (i32, i32, i32) {
    %c0_i32 = arith.constant 0 : i32
    %c0_i32_0 = arith.constant 0 : i32
    %c0_i32_1 = arith.constant 0 : i32
    return %arg0, %c0_i32, %c0_i32_0 : i32, i32, i32
  }
  func.func @transform_3(%arg0: i32, %arg1: i32) -> (i32, i32, i32) {
    %c0_i32 = arith.constant 0 : i32
    %c0_i32_0 = arith.constant 0 : i32
    %c0_i32_1 = arith.constant 0 : i32
    return %arg0, %c0_i32, %c0_i32_0 : i32, i32, i32
  }
  func.func @transform_4(%arg0: i32, %arg1: i32) -> (i32, i32, i32) {
    %c0_i32 = arith.constant 0 : i32
    %c0_i32_0 = arith.constant 0 : i32
    %c0_i32_1 = arith.constant 0 : i32
    return %arg0, %c0_i32, %c0_i32_0 : i32, i32, i32
  }
}

</mosaic_0001>

<llo_original>
// kernel: tpu_custom_call.1
$region0: #{tpu_custom_call.1}
  #allocation0 [shape = 'u32[]', space=smem, size = 0x4, offset = 0x4, fixed_abs, tag = 'smem constant byte address 0x4 - core index']
  #allocation1 [shape = 'u32[144,128]{1,0:T(1,128)}', space=vmem, size = 0x12000, scoped, tag = 'internal scratch']
  #allocation11 [shape = 's32[]', space=sflag, size = 0x4, offset = 0, fixed_abs, tag = 'sflag constant byte address 0x0 - dummy sync flag']
  %s0 = inlined_call_operand.hbm [shape: bf16[2,96,64], index: 0, kind: input, shape index: {}]
  %s1 = inlined_call_operand.hbm [shape: bf16[64,256], index: 1, kind: input, shape index: {}]
  %s2 = inlined_call_operand.hbm [shape: f32[2,1,128], index: 2, kind: output, shape index: {0}]
  %s3 = inlined_call_operand.hbm [shape: f32[2,1,128], index: 3, kind: output, shape index: {1}]
  %s4 = inlined_call_operand.hbm [shape: f32[2,1,128], index: 4, kind: output, shape index: {2}]
  %5 = xla_tuple %s2, %s3, %s4
  %s6 = sld [smem:[#allocation0]]
  $region77: #{tpu_custom_call.1} parent=0
    _
  %s8 = ssub.s32 1, %s6
  %s9 = scalar_select 0, %s8, %s6
  $region1: #{tpu_custom_call.1} parent=0
    #allocation2 [shape = 'u8[49152]{0}', space=vmem, size = 0xc000, scoped, tag = 'input window, operand 0']
    #allocation3 [shape = 's32[2]{0}', space=sflag, size = 0x8, scoped, tag = 'scoped memory for tpu_custom_call.1']
    #allocation4 [shape = 's32[2]{0}', space=sflag, size = 0x8, scoped, tag = 'scoped memory for tpu_custom_call.1']
    #allocation5 [shape = 'u8[32768]{0}', space=vmem, size = 0x8000, scoped, tag = 'input window, operand 1, single buffered']
    #allocation6 [shape = 's32[1]{0}', space=sflag, size = 0x4, scoped, tag = 'scoped memory for tpu_custom_call.1']
    #allocation7 [shape = 'u8[1024]{0}', space=vmem, size = 0x400, scoped, tag = 'output window, operand 0']
    #allocation8 [shape = 'u8[1024]{0}', space=vmem, size = 0x400, scoped, tag = 'output window, operand 1']
    #allocation9 [shape = 's32[2]{0}', space=sflag, size = 0x8, scoped, tag = 'scoped memory for tpu_custom_call.1']
    #allocation10 [shape = 'u8[1024]{0}', space=vmem, size = 0x400, scoped, tag = 'output window, operand 2']
    %10 = vsyncpa [#allocation3], 0
    %s11 = scalar_lea.sflag [#allocation3], 1
    %12 = vsyncpa %s11, 0
    %13 = vsyncpa [#allocation6], 0
    %14 = vsyncpa [#allocation4], 0
    %s15 = scalar_lea.sflag [#allocation4], 1
    %16 = vsyncpa %s15, 0
    %17 = vsyncpa [#allocation9], 0
    %s18 = scalar_lea.sflag [#allocation9], 1
    %19 = vsyncpa %s18, 0
    loop: start=0, step=1, limit=4
    $region2: #{tpu_custom_call.1} parent=1 // loop_pre_header
      _
    $region3: #{tpu_custom_call.1} parent=1 // loop_header
      %s21 = sphi 0, %s25
      %p22 = scmp.ge.s32.totalorder %s21, 4
      %s28 = sphi 0, %s40
      %s29 = sphi 0, %s36
      %s30 = sphi 0, %s28
      %s31 = sphi 0, %s29
      %s32 = sphi 0, %s30
      %s33 = sphi 0, %s31
      %s45 = sphi 0, %s47
      %s48 = sphi 0, %s45
      %s49 = sphi 0, %s48
      %s65 = sphi 0, %s49
      %s69 = sphi 0, %s69
      %s71 = sphi 0, %s69
      %s72 = sphi 0, %s71
      %s86 = sphi 0, %s72
      %s92 = sphi 0, %s94
      %s95 = sphi 0, %s92
      %s96 = sphi 0, %s95
      %s112 = sphi 0, %s96
      %s118 = sphi 0, %s120
      %s121 = sphi 0, %s118
      %s122 = sphi 0, %s121
      %s138 = sphi 0, %s122
      %s144 = sphi 0, %s146
      %s147 = sphi 0, %s144
      %s148 = sphi 0, %s147
      %s164 = sphi 0, %s148
    $region4: #{tpu_custom_call.1} parent=1 // loop_header_branch
      %24 = sbr.rel (%p22) target = $region8
    $region5: #{tpu_custom_call.1} parent=1 // loop_body
      %s26 = ssub.s32 %s21, 1
      %s27 = ssub.s32 %s21, 2
      %s34 = sadd.s32 1, %s29
      %p35 = scmp.ge.s32.totalorder %s34, 1
      %s36 = scalar_select %p35, 0, %s34
      %s37 = sadd.s32 1, %s28
      %s38 = scalar_select %p35, %s37, %s28
      %p39 = scmp.ge.s32.totalorder %s38, 2
      %s40 = scalar_select %p39, 0, %s38
      %s41 = sadd.s32 %s28, %s29
      %s42 = sadd.s32 %s40, %s36
      %s43 = ssub.s32 %s41, %s42
      %p44 = scmp.eq.s32.totalorder %s43, 0
      %s46 = sadd.s32 %s45, 1
      %s47 = scalar_select %p44, %s45, %s46
      %p50 = pneg %p44
      %p51 = scmp.eq.s32.totalorder %s21, 1
      %p52 = por %p50, %p51
      %p53 = scmp.ne.s32.totalorder %s45, %s48
      %p54 = scmp.eq.s32.totalorder %s21, 0
      %p55 = por %p53, %p54
      %p56 = scmp.ne.s32.totalorder %s45, %s48
      %p57 = scmp.eq.s32.totalorder %s26, 1
      %p58 = por %p56, %p57
      %p59 = scmp.ne.s32.totalorder %s48, %s49
      %p60 = scmp.eq.s32.totalorder %s26, 0
      %p61 = por %p59, %p60
      %p62 = scmp.ne.s32.totalorder %s48, %s49
      %p63 = scmp.eq.s32.totalorder %s27, 1
      %p64 = por %p62, %p63
      %p66 = scmp.ne.s32.totalorder %s49, %s65
      %p67 = scmp.eq.s32.totalorder %s27, 0
      %p68 = por %p66, %p67
      %s70 = sadd.s32 %s69, 1
      %p73 = scmp.eq.s32.totalorder %s21, 1
      %p74 = scmp.ne.s32.totalorder %s69, %s71
      %p75 = scmp.eq.s32.totalorder %s21, 0
      %p76 = por %p74, %p75
      %p77 = scmp.ne.s32.totalorder %s69, %s71
      %p78 = scmp.eq.s32.totalorder %s26, 1
      %p79 = por %p77, %p78
      %p80 = scmp.ne.s32.totalorder %s71, %s72
      %p81 = scmp.eq.s32.totalorder %s26, 0
      %p82 = por %p80, %p81
      %p83 = scmp.ne.s32.totalorder %s71, %s72
      %p84 = scmp.eq.s32.totalorder %s27, 1
      %p85 = por %p83, %p84
      %p87 = scmp.ne.s32.totalorder %s72, %s86
      %p88 = scmp.eq.s32.totalorder %s27, 0
      %p89 = por %p87, %p88
      %s90 = ssub.s32 %s28, %s40
      %p91 = scmp.eq.s32.totalorder %s90, 0
      %s93 = sadd.s32 %s92, 1
      %s94 = scalar_select %p91, %s92, %s93
      %p97 = pneg %p91
      %p98 = scmp.eq.s32.totalorder %s21, 1
      %p99 = por %p97, %p98
      %p100 = scmp.ne.s32.totalorder %s92, %s95
      %p101 = scmp.eq.s32.totalorder %s21, 0
      %p102 = por %p100, %p101
      %p103 = scmp.ne.s32.totalorder %s92, %s95
      %p104 = scmp.eq.s32.totalorder %s26, 1
      %p105 = por %p103, %p104
      %p106 = scmp.ne.s32.totalorder %s95, %s96
      %p107 = scmp.eq.s32.totalorder %s26, 0
      %p108 = por %p106, %p107
      %p109 = scmp.ne.s32.totalorder %s95, %s96
      %p110 = scmp.eq.s32.totalorder %s27, 1
      %p111 = por %p109, %p110
      %p113 = scmp.ne.s32.totalorder %s96, %s112
      %p114 = scmp.eq.s32.totalorder %s27, 0
      %p115 = por %p113, %p114
      %s116 = ssub.s32 %s28, %s40
      %p117 = scmp.eq.s32.totalorder %s116, 0
      %s119 = sadd.s32 %s118, 1
      %s120 = scalar_select %p117, %s118, %s119
      %p123 = pneg %p117
      %p124 = scmp.eq.s32.totalorder %s21, 1
      %p125 = por %p123, %p124
      %p126 = scmp.ne.s32.totalorder %s118, %s121
      %p127 = scmp.eq.s32.totalorder %s21, 0
      %p128 = por %p126, %p127
      %p129 = scmp.ne.s32.totalorder %s118, %s121
      %p130 = scmp.eq.s32.totalorder %s26, 1
      %p131 = por %p129, %p130
      %p132 = scmp.ne.s32.totalorder %s121, %s122
      %p133 = scmp.eq.s32.totalorder %s26, 0
      %p134 = por %p132, %p133
      %p135 = scmp.ne.s32.totalorder %s121, %s122
      %p136 = scmp.eq.s32.totalorder %s27, 1
      %p137 = por %p135, %p136
      %p139 = scmp.ne.s32.totalorder %s122, %s138
      %p140 = scmp.eq.s32.totalorder %s27, 0
      %p141 = por %p139, %p140
      %s142 = ssub.s32 %s28, %s40
      %p143 = scmp.eq.s32.totalorder %s142, 0
      %s145 = sadd.s32 %s144, 1
      %s146 = scalar_select %p143, %s144, %s145
      %p149 = pneg %p143
      %p150 = scmp.eq.s32.totalorder %s21, 1
      %p151 = por %p149, %p150
      %p152 = scmp.ne.s32.totalorder %s144, %s147
      %p153 = scmp.eq.s32.totalorder %s21, 0
      %p154 = por %p152, %p153
      %p155 = scmp.ne.s32.totalorder %s144, %s147
      %p156 = scmp.eq.s32.totalorder %s26, 1
      %p157 = por %p155, %p156
      %p158 = scmp.ne.s32.totalorder %s147, %s148
      %p159 = scmp.eq.s32.totalorder %s26, 0
      %p160 = por %p158, %p159
      %p161 = scmp.ne.s32.totalorder %s147, %s148
      %p162 = scmp.eq.s32.totalorder %s27, 1
      %p163 = por %p161, %p162
      %p165 = scmp.ne.s32.totalorder %s148, %s164
      %p166 = scmp.eq.s32.totalorder %s27, 0
      %p167 = por %p165, %p166
      %p168 = scmp.le.s32.totalorder 1, %s21
      %p169 = scmp.lt.s32.totalorder %s21, 3
      %p170 = pnand %p168, %p169
      %p171 = pneg %p170
      // Predicated region
      $region9: #{tpu_custom_call.1} parent=5 // pred_check
        _
      $region10: #{tpu_custom_call.1} parent=5 // pred_check_branch
        %173 = sbr.rel (%p170) target = $region12
      $region11: #{tpu_custom_call.1} parent=5 // pred_region
        %s174 = ssub.s32 %s21, 1
        // Predicated region
        $region13: #{tpu_custom_call.1} parent=11 // pred_check
          %p175 = pneg %p82
        $region14: #{tpu_custom_call.1} parent=11 // pred_check_branch
          %177 = sbr.rel (%p175) target = $region16
        $region15: #{tpu_custom_call.1} parent=11 // pred_region
          %s179 = ssub.s32 1024, 1024
          %180 = vsyncadd [#allocation6], %s179
          %s181 = sshll.u32 [#allocation5], 4
          %s182 = int_to_ptr.vmem [resolvable:$true] %s181
          %187 = dma.hbm_to_vmem [thread:$0]  %s1, 1024, %s182, [#allocation6], 128, 128, 8
        $region16: #{tpu_custom_call.1} parent=11 // pred_fallthru
          _
      $region12: #{tpu_custom_call.1} parent=5 // pred_fallthru
        _
      %p188 = scmp.lt.s32.totalorder %s21, 2
      // Predicated region
      $region17: #{tpu_custom_call.1} parent=5 // pred_check
        %p189 = pneg %p188
      $region18: #{tpu_custom_call.1} parent=5 // pred_check_branch
        %191 = sbr.rel (%p189) target = $region20
      $region19: #{tpu_custom_call.1} parent=5 // pred_region
        // Predicated region
        $region21: #{tpu_custom_call.1} parent=19 // pred_check
          %p192 = pneg %p55
        $region22: #{tpu_custom_call.1} parent=19 // pred_check_branch
          %194 = sbr.rel (%p192) target = $region24
        $region23: #{tpu_custom_call.1} parent=19 // pred_region
          #allocation12 [shape = 'u32[6]{0}', space=smem, size = 0x18, scoped, tag = 'DMA stride descriptor']
          %s195 = sand.u32 %s45, 1
          %s196 = scalar_lea.sflag [#allocation3], %s195
          %s197 = sand.u32 %s45, 1
          %s198 = smul.addr %s197, 48
          %s199 = scalar_lea.vmem [#allocation2], %s198
          %s200 = sadd.s32 %s28, %s29
          %s201 = smul.u32 6, %s200
          %s203 = ssub.s32 768, 768
          %204 = vsyncadd %s196, %s203
          %s205 = smul.addr %s201, 64
          %s206 = scalar_lea.hbm %s0, %s205
          %s208 = sshll.u32 1, 14
          %s209 = sxor.u32 4294967295, %s208
          %s211 = sld [smem:[#allocation0]]
          %s212 = sadd.s32 2, %s211
          %s214 = sshll.u32 7, 26
          %s215 = sxor.u32 4294967295, %s214
          %s216 = sand.u32 0, %s215
          %s217 = sshll.u32 %s212, 26
          %s218 = sor.u32 %s216, %s217
          %s219 = sshll.u32 %s199, 4
          %s220 = int_to_ptr.vmem [resolvable:$true] %s219
          %226 = sst [smem:[#allocation12]] 768
          %s227 = scalar_lea.smem [#allocation12], 1
          %228 = sst [smem:[%s227]] 384
          %s229 = scalar_lea.smem [#allocation12], 2
          %230 = sst [smem:[%s229]] 6
          %s231 = scalar_lea.smem [#allocation12], 3
          %232 = sst [smem:[%s231]] 64
          %s233 = scalar_lea.smem [#allocation12], 4
          %234 = sst [smem:[%s233]] 64
          %s235 = scalar_lea.smem [#allocation12], 5
          %236 = sst [smem:[%s235]] 4
          %238 = dma.general %s206, 768, %s220, %s196, [#allocation11], [#allocation12], %s218, 0
        $region24: #{tpu_custom_call.1} parent=19 // pred_fallthru
          _
      $region20: #{tpu_custom_call.1} parent=5 // pred_fallthru
        _
      %p239 = scmp.le.s32.totalorder 1, %s21
      %p240 = scmp.lt.s32.totalorder %s21, 3
      %p241 = pnand %p239, %p240
      %p242 = pneg %p241
      // Predicated region
      $region25: #{tpu_custom_call.1} parent=5 // pred_check
        _
      $region26: #{tpu_custom_call.1} parent=5 // pred_check_branch
        %244 = sbr.rel (%p241) target = $region28
      $region27: #{tpu_custom_call.1} parent=5 // pred_region
        %s245 = ssub.s32 %s21, 1
        %s246 = sand.u32 %s48, 1
        %s247 = scalar_lea.sflag [#allocation3], %s246
        %s248 = sand.u32 %s48, 1
        %s249 = smul.addr %s248, 48
        %s250 = scalar_lea.vmem [#allocation2], %s249
        // Predicated region
        $region29: #{tpu_custom_call.1} parent=27 // pred_check
          %p251 = pneg %p61
        $region30: #{tpu_custom_call.1} parent=27 // pred_check_branch
          %253 = sbr.rel (%p251) target = $region32
        $region31: #{tpu_custom_call.1} parent=27 // pred_region
          %254 = dma.done %s247, 768
        $region32: #{tpu_custom_call.1} parent=27 // pred_fallthru
          _
        // Predicated region
        $region33: #{tpu_custom_call.1} parent=27 // pred_check
          %p255 = pneg %p82
        $region34: #{tpu_custom_call.1} parent=27 // pred_check_branch
          %257 = sbr.rel (%p255) target = $region36
        $region35: #{tpu_custom_call.1} parent=27 // pred_region
          %258 = dma.done [#allocation6], 1024
        $region36: #{tpu_custom_call.1} parent=27 // pred_fallthru
          _
        %s259 = sand.u32 %s48, 1
        %s260 = scalar_lea.sflag [#allocation3], %s259
        %s261 = sand.u32 %s48, 1
        %s262 = smul.addr %s261, 48
        %s263 = scalar_lea.vmem [#allocation2], %s262
        %p264 = pneg %p61
        %p265 = pneg %p58
        %p266 = pneg %p82
        %p267 = pneg %p79
        %p268 = pneg %p108
        %p269 = pneg %p105
        %s270 = sand.u32 %s95, 1
        %s271 = scalar_lea.sflag [#allocation4], %s270
        %s272 = sand.u32 %s95, 1
        %s273 = scalar_lea.vmem [#allocation7], %s272
        %p274 = pneg %p134
        %p275 = pneg %p131
        %s276 = sand.u32 %s26, 1
        %s277 = scalar_lea.sflag [#allocation9], %s276
        %s278 = sand.u32 %s121, 1
        %s279 = scalar_lea.vmem [#allocation8], %s278
        %p280 = pneg %p160
        %p281 = pneg %p157
        %s282 = sand.u32 %s26, 1
        %s283 = scalar_lea.sflag [#allocation9], %s282
        %s284 = sand.u32 %s147, 1
        %s285 = scalar_lea.vmem [#allocation10], %s284
        %s286 = sadd.s32 %s30, %s31
        %s287 = smul.u32 6, %s286
        %p289 = scmp.eq.s32.totalorder %s31, 0
        // Predicated region
        $region37: #{tpu_custom_call.1} parent=27 // pred_check
          %p290 = pneg %p289
        $region38: #{tpu_custom_call.1} parent=27 // pred_check_branch
          %292 = sbr.rel (%p290) target = $region40
        $region39: #{tpu_custom_call.1} parent=27 // pred_region
          %293 = vst [vmem:[%s273] sm:$0x1] 0.0
          %294 = vst [vmem:[%s279] sm:$0x1] 0.0
          %295 = vst [vmem:[%s285] sm:$0x1] 0.0
        $region40: #{tpu_custom_call.1} parent=27 // pred_fallthru
          _
        %v296 = vld [vmem:[#allocation5] sm:$0xff]
        %v297 = vld [vmem:[#allocation5 + $0x8] sm:$0xff]
        %v298 = vld [vmem:[#allocation5 + $0x10] sm:$0xff]
        %v299 = vld [vmem:[#allocation5 + $0x18] sm:$0xff]
        %v300 = vld [vmem:[#allocation5 + $0x20] sm:$0xff]
        %v301 = vld [vmem:[#allocation5 + $0x28] sm:$0xff]
        %v302 = vld [vmem:[#allocation5 + $0x30] sm:$0xff]
        %v303 = vld [vmem:[#allocation5 + $0x38] sm:$0xff]
        %v304 = vld [vmem:[%s250] sm:$0xf]
        %v305 = vld [vmem:[%s250 + $0x4] sm:$0xf]
        %v306 = vld [vmem:[%s250 + $0x8] sm:$0xf]
        %v307 = vld [vmem:[%s250 + $0xc] sm:$0xf]
        %v308 = vld [vmem:[%s250 + $0x10] sm:$0xf]
        %v309 = vld [vmem:[%s250 + $0x14] sm:$0xf]
        %s310 = scalar_lea.vmem %s250, 24 [#allocation2]
        %v311 = vld [vmem:[%s310] sm:$0xf]
        %v312 = vld [vmem:[%s310 + $0x4] sm:$0xf]
        %v313 = vld [vmem:[%s310 + $0x8] sm:$0xf]
        %v314 = vld [vmem:[%s310 + $0xc] sm:$0xf]
        %v315 = vld [vmem:[%s310 + $0x10] sm:$0xf]
        %v316 = vld [vmem:[%s310 + $0x14] sm:$0xf]
        %v323 = vunpack.c.l.b16 %v304
        %v324 = vunpack.c.l.b16 %v305
        %v325 = vunpack.c.l.b16 %v306
        %v326 = vunpack.c.l.b16 %v307
        %v327 = vunpack.c.l.b16 %v308
        %v328 = vunpack.c.l.b16 %v309
        %v329 = vpack.c.b16 %v324, %v323
        %v330 = vpack.c.b16 %v326, %v325
        %v331 = vpack.c.b16 %v328, %v327
        %v340 = vunpack.c.l.b16 %v296
        %v341 = vunpack.c.h.b16 %v296
        %v342 = vunpack.c.l.b16 %v297
        %v343 = vunpack.c.h.b16 %v297
        %v344 = vunpack.c.l.b16 %v298
        %v345 = vunpack.c.h.b16 %v298
        %v346 = vunpack.c.l.b16 %v299
        %v347 = vunpack.c.h.b16 %v299
        %v348 = vunpack.c.l.b16 %v300
        %v349 = vunpack.c.h.b16 %v300
        %v350 = vunpack.c.l.b16 %v301
        %v351 = vunpack.c.h.b16 %v301
        %v352 = vunpack.c.l.b16 %v302
        %v353 = vunpack.c.h.b16 %v302
        %v354 = vunpack.c.l.b16 %v303
        %v355 = vunpack.c.h.b16 %v303
        %v356 = vpack.c.b16 %v342, %v340
        %v357 = vpack.c.b16 %v343, %v341
        %v358 = vpack.c.b16 %v346, %v344
        %v359 = vpack.c.b16 %v347, %v345
        %v360 = vpack.c.b16 %v350, %v348
        %v361 = vpack.c.b16 %v351, %v349
        %v362 = vpack.c.b16 %v354, %v352
        %v363 = vpack.c.b16 %v355, %v353
        %vm372 = vcmask 523264
        %v374 = vsel %vm372, %v329, 0
        %v377 = vsel %vm372, %v330, 0
        %v380 = vsel %vm372, %v331, 0
        %382 = vmatprep.subr.bf16.mxu0 %v357
        %383 = vmatpush1.bf16.msra.mxu0 %v356
        %384 = vmatprep.subr.bf16.mxu0 %v359
        %385 = vmatpush1.bf16.msra.mxu0 %v358
        %386 = vmatprep.subr.bf16.mxu0 %v361
        %387 = vmatpush1.bf16.msra.mxu0 %v360
        %388 = vmatprep.subr.bf16.mxu0 %v363
        %389 = vmatpush1.bf16.msra.mxu0 %v362
        %390 = vmatprep.subr.bf16.mxu0 0
        %391 = vmatpush1.bf16.msra.mxu0 0
        %392 = vmatprep.subr.bf16.mxu0 0
        %393 = vmatpush1.bf16.msra.mxu0 0
        %394 = vmatprep.subr.bf16.mxu0 0
        %395 = vmatpush1.bf16.msra.mxu0 0
        %396 = vmatprep.subr.bf16.mxu0 0
        %397 = vmatpush1.bf16.msra.mxu0 0
        %398 = vmatprep.subr.bf16.mxu0 0
        %399 = vmatpush1.bf16.msra.mxu0 0
        %400 = vmatprep.subr.bf16.mxu0 0
        %401 = vmatpush1.bf16.msra.mxu0 0
        %402 = vmatprep.subr.bf16.mxu0 0
        %403 = vmatpush1.bf16.msra.mxu0 0
        %404 = vmatprep.subr.bf16.mxu0 0
        %405 = vmatpush1.bf16.msra.mxu0 0
        %406 = vmatprep.subr.bf16.mxu0 0
        %407 = vmatpush1.bf16.msra.mxu0 0
        %408 = vmatprep.subr.bf16.mxu0 0
        %409 = vmatpush1.bf16.msra.mxu0 0
        %410 = vmatprep.subr.bf16.mxu0 0
        %411 = vmatpush1.bf16.msra.mxu0 0
        %412 = vmatprep.subr.bf16.mxu0 0
        %413 = vmatpush1.bf16.msra.mxu0 0
        %414 = vmatprep.mubr.bf16.mxu0 0
        %415 = vmatmul.mubr.bf16.gmra.mrb[0].mxu0 %v374
        %v416 = vpop.f32.mrb[0].mxu0
        %v417 = vadd.f32 0.0, %v416
        %v418 = vpop.f32.mrb[0].mxu0
        %v419 = vadd.f32 0.0, %v418
        %v420 = vpop.f32.mrb[0].mxu0
        %v421 = vadd.f32 0.0, %v420
        %v422 = vpop.f32.mrb[0].mxu0
        %v423 = vadd.f32 0.0, %v422
        %424 = vmatprep.mubr.bf16.mxu0 0
        %425 = vmatmul.mubr.bf16.gmra.mrb[0].mxu0 %v377
        %v426 = vpop.f32.mrb[0].mxu0
        %v427 = vadd.f32 0.0, %v426
        %v428 = vpop.f32.mrb[0].mxu0
        %v429 = vadd.f32 0.0, %v428
        %v430 = vpop.f32.mrb[0].mxu0
        %v431 = vadd.f32 0.0, %v430
        %v432 = vpop.f32.mrb[0].mxu0
        %v433 = vadd.f32 0.0, %v432
        %434 = vmatprep.mubr.bf16.mxu0 0
        %435 = vmatmul.mubr.bf16.gmra.mrb[0].mxu0 %v380
        %v436 = vpop.f32.mrb[0].mxu0
        %v437 = vadd.f32 0.0, %v436
        %v438 = vpop.f32.mrb[0].mxu0
        %v439 = vadd.f32 0.0, %v438
        %v440 = vpop.f32.mrb[0].mxu0
        %v441 = vadd.f32 0.0, %v440
        %v442 = vpop.f32.mrb[0].mxu0
        %v443 = vadd.f32 0.0, %v442
        %444 = vdwg.mxu0
        %v451 = vunpack.c.l.b16 %v311
        %v452 = vunpack.c.l.b16 %v312
        %v453 = vunpack.c.l.b16 %v313
        %v454 = vunpack.c.l.b16 %v314
        %v455 = vunpack.c.l.b16 %v315
        %v456 = vunpack.c.l.b16 %v316
        %v457 = vpack.c.b16 %v452, %v451
        %v458 = vpack.c.b16 %v454, %v453
        %v459 = vpack.c.b16 %v456, %v455
        %v461 = vsel %vm372, %v457, 0
        %v464 = vsel %vm372, %v458, 0
        %v467 = vsel %vm372, %v459, 0
        %469 = vmatprep.subr.bf16.mxu0 %v357
        %470 = vmatpush1.bf16.msra.mxu0 %v356
        %471 = vmatprep.subr.bf16.mxu0 %v359
        %472 = vmatpush1.bf16.msra.mxu0 %v358
        %473 = vmatprep.subr.bf16.mxu0 %v361
        %474 = vmatpush1.bf16.msra.mxu0 %v360
        %475 = vmatprep.subr.bf16.mxu0 %v363
        %476 = vmatpush1.bf16.msra.mxu0 %v362
        %477 = vmatprep.subr.bf16.mxu0 0
        %478 = vmatpush1.bf16.msra.mxu0 0
        %479 = vmatprep.subr.bf16.mxu0 0
        %480 = vmatpush1.bf16.msra.mxu0 0
        %481 = vmatprep.subr.bf16.mxu0 0
        %482 = vmatpush1.bf16.msra.mxu0 0
        %483 = vmatprep.subr.bf16.mxu0 0
        %484 = vmatpush1.bf16.msra.mxu0 0
        %485 = vmatprep.subr.bf16.mxu0 0
        %486 = vmatpush1.bf16.msra.mxu0 0
        %487 = vmatprep.subr.bf16.mxu0 0
        %488 = vmatpush1.bf16.msra.mxu0 0
        %489 = vmatprep.subr.bf16.mxu0 0
        %490 = vmatpush1.bf16.msra.mxu0 0
        %491 = vmatprep.subr.bf16.mxu0 0
        %492 = vmatpush1.bf16.msra.mxu0 0
        %493 = vmatprep.subr.bf16.mxu0 0
        %494 = vmatpush1.bf16.msra.mxu0 0
        %495 = vmatprep.subr.bf16.mxu0 0
        %496 = vmatpush1.bf16.msra.mxu0 0
        %497 = vmatprep.subr.bf16.mxu0 0
        %498 = vmatpush1.bf16.msra.mxu0 0
        %499 = vmatprep.subr.bf16.mxu0 0
        %500 = vmatpush1.bf16.msra.mxu0 0
        %501 = vmatprep.mubr.bf16.mxu0 0
        %502 = vmatmul.mubr.bf16.gmra.mrb[0].mxu0 %v461
        %v503 = vpop.f32.mrb[0].mxu0
        %v504 = vadd.f32 0.0, %v503
        %v505 = vpop.f32.mrb[0].mxu0
        %v506 = vadd.f32 0.0, %v505
        %v507 = vpop.f32.mrb[0].mxu0
        %v508 = vadd.f32 0.0, %v507
        %v509 = vpop.f32.mrb[0].mxu0
        %v510 = vadd.f32 0.0, %v509
        %511 = vmatprep.mubr.bf16.mxu0 0
        %512 = vmatmul.mubr.bf16.gmra.mrb[0].mxu0 %v464
        %v513 = vpop.f32.mrb[0].mxu0
        %v514 = vadd.f32 0.0, %v513
        %v515 = vpop.f32.mrb[0].mxu0
        %v516 = vadd.f32 0.0, %v515
        %v517 = vpop.f32.mrb[0].mxu0
        %v518 = vadd.f32 0.0, %v517
        %v519 = vpop.f32.mrb[0].mxu0
        %v520 = vadd.f32 0.0, %v519
        %521 = vmatprep.mubr.bf16.mxu0 0
        %522 = vmatmul.mubr.bf16.gmra.mrb[0].mxu0 %v467
        %v523 = vpop.f32.mrb[0].mxu0
        %v524 = vadd.f32 0.0, %v523
        %v525 = vpop.f32.mrb[0].mxu0
        %v526 = vadd.f32 0.0, %v525
        %v527 = vpop.f32.mrb[0].mxu0
        %v528 = vadd.f32 0.0, %v527
        %v529 = vpop.f32.mrb[0].mxu0
        %v530 = vadd.f32 0.0, %v529
        %531 = vdwg.mxu0
        %v532 = vmul.f32 %v417, %v417
        %v533 = vmul.f32 %v421, %v421
        %v534 = vmul.f32 %v427, %v427
        %v535 = vmul.f32 %v431, %v431
        %v536 = vmul.f32 %v437, %v437
        %v537 = vmul.f32 %v441, %v441
        %v538 = vmul.f32 %v419, %v419
        %v539 = vmul.f32 %v423, %v423
        %v540 = vmul.f32 %v429, %v429
        %v541 = vmul.f32 %v433, %v433
        %v542 = vmul.f32 %v439, %v439
        %v543 = vmul.f32 %v443, %v443
        %v544 = vadd.f32 %v532, %v538
        %v545 = vadd.f32 %v533, %v539
        %v546 = vadd.f32 %v534, %v540
        %v547 = vadd.f32 %v535, %v541
        %v548 = vadd.f32 %v536, %v542
        %v549 = vadd.f32 %v537, %v543
        %v550 = vmax.f32 %v544, 1e-07
        %v551 = vmax.f32 %v545, 1e-07
        %v552 = vmax.f32 %v546, 1e-07
        %v553 = vmax.f32 %v547, 1e-07
        %v554 = vmax.f32 %v548, 1e-07
        %v555 = vmax.f32 %v549, 1e-07
        %v556 = vrsqrt.pop %v550
        %v557 = vmul.f32 %v550, %v556
        %vm558 = vcmp.eq.f32.partialorder %v550, inf
        %v559 = vsel %vm558, %v550, %v557
        %vm560 = vcmp.eq.f32.partialorder %v550, 0.0
        %v561 = vand.u32 %v550, 2147483648
        %v562 = vsel %vm560, %v561, %v559
        %v563 = vrsqrt.pop %v551
        %v564 = vmul.f32 %v551, %v563
        %vm565 = vcmp.eq.f32.partialorder %v551, inf
        %v566 = vsel %vm565, %v551, %v564
        %vm567 = vcmp.eq.f32.partialorder %v551, 0.0
        %v568 = vand.u32 %v551, 2147483648
        %v569 = vsel %vm567, %v568, %v566
        %v570 = vrsqrt.pop %v552
        %v571 = vmul.f32 %v552, %v570
        %vm572 = vcmp.eq.f32.partialorder %v552, inf
        %v573 = vsel %vm572, %v552, %v571
        %vm574 = vcmp.eq.f32.partialorder %v552, 0.0
        %v575 = vand.u32 %v552, 2147483648
        %v576 = vsel %vm574, %v575, %v573
        %v577 = vrsqrt.pop %v553
        %v578 = vmul.f32 %v553, %v577
        %vm579 = vcmp.eq.f32.partialorder %v553, inf
        %v580 = vsel %vm579, %v553, %v578
        %vm581 = vcmp.eq.f32.partialorder %v553, 0.0
        %v582 = vand.u32 %v553, 2147483648
        %v583 = vsel %vm581, %v582, %v580
        %v584 = vrsqrt.pop %v554
        %v585 = vmul.f32 %v554, %v584
        %vm586 = vcmp.eq.f32.partialorder %v554, inf
        %v587 = vsel %vm586, %v554, %v585
        %vm588 = vcmp.eq.f32.partialorder %v554, 0.0
        %v589 = vand.u32 %v554, 2147483648
        %v590 = vsel %vm588, %v589, %v587
        %v591 = vrsqrt.pop %v555
        %v592 = vmul.f32 %v555, %v591
        %vm593 = vcmp.eq.f32.partialorder %v555, inf
        %v594 = vsel %vm593, %v555, %v592
        %vm595 = vcmp.eq.f32.partialorder %v555, 0.0
        %v596 = vand.u32 %v555, 2147483648
        %v597 = vsel %vm595, %v596, %v594
        %v598 = vmul.f32 %v504, %v504
        %v599 = vmul.f32 %v508, %v508
        %v600 = vmul.f32 %v514, %v514
        %v601 = vmul.f32 %v518, %v518
        %v602 = vmul.f32 %v524, %v524
        %v603 = vmul.f32 %v528, %v528
        %v604 = vmul.f32 %v506, %v506
        %v605 = vmul.f32 %v510, %v510
        %v606 = vmul.f32 %v516, %v516
        %v607 = vmul.f32 %v520, %v520
        %v608 = vmul.f32 %v526, %v526
        %v609 = vmul.f32 %v530, %v530
        %v610 = vadd.f32 %v598, %v604
        %v611 = vadd.f32 %v599, %v605
        %v612 = vadd.f32 %v600, %v606
        %v613 = vadd.f32 %v601, %v607
        %v614 = vadd.f32 %v602, %v608
        %v615 = vadd.f32 %v603, %v609
        %v616 = vmax.f32 %v610, 1e-07
        %v617 = vmax.f32 %v611, 1e-07
        %v618 = vmax.f32 %v612, 1e-07
        %v619 = vmax.f32 %v613, 1e-07
        %v620 = vmax.f32 %v614, 1e-07
        %v621 = vmax.f32 %v615, 1e-07
        %v622 = vrsqrt.pop %v616
        %v623 = vmul.f32 %v616, %v622
        %vm624 = vcmp.eq.f32.partialorder %v616, inf
        %v625 = vsel %vm624, %v616, %v623
        %vm626 = vcmp.eq.f32.partialorder %v616, 0.0
        %v627 = vand.u32 %v616, 2147483648
        %v628 = vsel %vm626, %v627, %v625
        %v629 = vrsqrt.pop %v617
        %v630 = vmul.f32 %v617, %v629
        %vm631 = vcmp.eq.f32.partialorder %v617, inf
        %v632 = vsel %vm631, %v617, %v630
        %vm633 = vcmp.eq.f32.partialorder %v617, 0.0
        %v634 = vand.u32 %v617, 2147483648
        %v635 = vsel %vm633, %v634, %v632
        %v636 = vrsqrt.pop %v618
        %v637 = vmul.f32 %v618, %v636
        %vm638 = vcmp.eq.f32.partialorder %v618, inf
        %v639 = vsel %vm638, %v618, %v637
        %vm640 = vcmp.eq.f32.partialorder %v618, 0.0
        %v641 = vand.u32 %v618, 2147483648
        %v642 = vsel %vm640, %v641, %v639
        %v643 = vrsqrt.pop %v619
        %v644 = vmul.f32 %v619, %v643
        %vm645 = vcmp.eq.f32.partialorder %v619, inf
        %v646 = vsel %vm645, %v619, %v644
        %vm647 = vcmp.eq.f32.partialorder %v619, 0.0
        %v648 = vand.u32 %v619, 2147483648
        %v649 = vsel %vm647, %v648, %v646
        %v650 = vrsqrt.pop %v620
        %v651 = vmul.f32 %v620, %v650
        %vm652 = vcmp.eq.f32.partialorder %v620, inf
        %v653 = vsel %vm652, %v620, %v651
        %vm654 = vcmp.eq.f32.partialorder %v620, 0.0
        %v655 = vand.u32 %v620, 2147483648
        %v656 = vsel %vm654, %v655, %v653
        %v657 = vrsqrt.pop %v621
        %v658 = vmul.f32 %v621, %v657
        %vm659 = vcmp.eq.f32.partialorder %v621, inf
        %v660 = vsel %vm659, %v621, %v658
        %vm661 = vcmp.eq.f32.partialorder %v621, 0.0
        %v662 = vand.u32 %v621, 2147483648
        %v663 = vsel %vm661, %v662, %v660
        %v664 = vsub.f32 %v628, %v562
        %v665 = vsub.f32 %v635, %v569
        %v666 = vsub.f32 %v642, %v576
        %v667 = vsub.f32 %v649, %v583
        %v668 = vsub.f32 %v656, %v590
        %v669 = vsub.f32 %v663, %v597
        %v670 = vld [vmem:[%s273] sm:$0x1]
        %v671 = vmul.f32 %v664, %v664
        %v672 = vmul.f32 %v665, %v665
        %v673 = vmul.f32 %v666, %v666
        %v674 = vmul.f32 %v667, %v667
        %v675 = vmul.f32 %v668, %v668
        %v676 = vmul.f32 %v669, %v669
        %v677 = vadd.f32 %v671, %v672
        %v678 = vadd.f32 %v677, %v673
        %v679 = vadd.f32 %v678, %v674
        %v680 = vadd.f32 %v679, %v675
        %v681 = vadd.f32 %v680, %v676
        %v682 = vrot.slane %v681, 4
        %v683 = vadd.f32 %v681, %v682
        %v684 = vrot.slane %v683, 2
        %v685 = vadd.f32 %v683, %v684
        %v686 = vrot.slane %v685, 1
        %v687 = vadd.f32 %v685, %v686
        %v688 = vadd.f32 %v670, %v687
        %689 = vst [vmem:[%s273] sm:$0x1] %v688
        %v690 = vld [vmem:[%s285] sm:$0x1]
        %v691 = vrcp.pop %v628
        %v692 = vmul.f32 %v562, %v691
        %v693 = vrcp.pop %v635
        %v694 = vmul.f32 %v569, %v693
        %v695 = vrcp.pop %v642
        %v696 = vmul.f32 %v576, %v695
        %v697 = vrcp.pop %v649
        %v698 = vmul.f32 %v583, %v697
        %v699 = vrcp.pop %v656
        %v700 = vmul.f32 %v590, %v699
        %v701 = vrcp.pop %v663
        %v702 = vmul.f32 %v597, %v701
        %v703 = vlog2.pop %v692
        %v704 = vmul.f32 %v703, 0.6931472
        %v705 = vlog2.pop %v694
        %v706 = vmul.f32 %v705, 0.6931472
        %v707 = vlog2.pop %v696
        %v708 = vmul.f32 %v707, 0.6931472
        %v709 = vlog2.pop %v698
        %v710 = vmul.f32 %v709, 0.6931472
        %v711 = vlog2.pop %v700
        %v712 = vmul.f32 %v711, 0.6931472
        %v713 = vlog2.pop %v702
        %v714 = vmul.f32 %v713, 0.6931472
        %v715 = vand.u32 2147483647, %v704
        %v716 = vand.u32 2147483647, %v706
        %v717 = vand.u32 2147483647, %v708
        %v718 = vand.u32 2147483647, %v710
        %v719 = vand.u32 2147483647, %v712
        %v720 = vand.u32 2147483647, %v714
        %v721 = vadd.f32 %v715, %v716
        %v722 = vadd.f32 %v721, %v717
        %v723 = vadd.f32 %v722, %v718
        %v724 = vadd.f32 %v723, %v719
        %v725 = vadd.f32 %v724, %v720
        %v726 = vrot.slane %v725, 4
        %v727 = vadd.f32 %v725, %v726
        %v728 = vrot.slane %v727, 2
        %v729 = vadd.f32 %v727, %v728
        %v730 = vrot.slane %v729, 1
        %v731 = vadd.f32 %v729, %v730
        %v732 = vadd.f32 %v690, %v731
        %733 = vst [vmem:[%s285] sm:$0x1] %v732
        %s734 = sadd.s32 %s30, %s31
        %s735 = smul.u32 %s734, 48
        %s736 = sadd.s32 %s735, 48
        %p737 = scmp.le.s32.totalorder %s736, 34
        // Predicated region
        $region41: #{tpu_custom_call.1} parent=27 // pred_check
          %p738 = pneg %p737
        $region42: #{tpu_custom_call.1} parent=27 // pred_check_branch
          %740 = sbr.rel (%p738) target = $region44
        $region43: #{tpu_custom_call.1} parent=27 // pred_region
          %v741 = vld [vmem:[%s279] sm:$0x1]
          %v742 = vmul.f32 %v628, %v628
          %v743 = vmul.f32 %v635, %v635
          %v744 = vmul.f32 %v642, %v642
          %v745 = vmul.f32 %v649, %v649
          %v746 = vmul.f32 %v656, %v656
          %v747 = vmul.f32 %v663, %v663
          %v748 = vadd.f32 %v742, %v743
          %v749 = vadd.f32 %v748, %v744
          %v750 = vadd.f32 %v749, %v745
          %v751 = vadd.f32 %v750, %v746
          %v752 = vadd.f32 %v751, %v747
          %v753 = vrot.slane %v752, 4
          %v754 = vadd.f32 %v752, %v753
          %v755 = vrot.slane %v754, 2
          %v756 = vadd.f32 %v754, %v755
          %v757 = vrot.slane %v756, 1
          %v758 = vadd.f32 %v756, %v757
          %v759 = vadd.f32 %v741, %v758
          %760 = vst [vmem:[%s279] sm:$0x1] %v759
        $region44: #{tpu_custom_call.1} parent=27 // pred_fallthru
          _
        %p761 = scmp.gt.s32.totalorder %s736, 34
        // Predicated region
        $region45: #{tpu_custom_call.1} parent=27 // pred_check
          %p762 = pneg %p761
        $region46: #{tpu_custom_call.1} parent=27 // pred_check_branch
          %764 = sbr.rel (%p762) target = $region48
        $region47: #{tpu_custom_call.1} parent=27 // pred_region
          %v765 = vlaneseq
          %v766 = vshrl.u32 %v765, 7
          %v767 = vadd.s32 %v766, 8
          %v768 = vadd.s32 %v766, 16
          %v769 = vadd.s32 %v766, 24
          %v770 = vadd.s32 %v766, 32
          %v771 = vadd.s32 %v766, 40
          %v772 = vstv %s735
          %v773 = vadd.s32 %v772, %v766
          %v774 = vadd.s32 %v772, %v767
          %v775 = vadd.s32 %v772, %v768
          %v776 = vadd.s32 %v772, %v769
          %v777 = vadd.s32 %v772, %v770
          %v778 = vadd.s32 %v772, %v771
          %vm779 = vcmp.lt.s32.totalorder %v773, 34
          %vm780 = vcmp.lt.s32.totalorder %v774, 34
          %vm781 = vcmp.lt.s32.totalorder %v775, 34
          %vm782 = vcmp.lt.s32.totalorder %v776, 34
          %vm783 = vcmp.lt.s32.totalorder %v777, 34
          %vm784 = vcmp.lt.s32.totalorder %v778, 34
          %v785 = vsel %vm779, %v628, 0.0
          %v786 = vsel %vm780, %v635, 0.0
          %v787 = vsel %vm781, %v642, 0.0
          %v788 = vsel %vm782, %v649, 0.0
          %v789 = vsel %vm783, %v656, 0.0
          %v790 = vsel %vm784, %v663, 0.0
          %v791 = vld [vmem:[%s279] sm:$0x1]
          %v792 = vmul.f32 %v785, %v785
          %v793 = vmul.f32 %v786, %v786
          %v794 = vmul.f32 %v787, %v787
          %v795 = vmul.f32 %v788, %v788
          %v796 = vmul.f32 %v789, %v789
          %v797 = vmul.f32 %v790, %v790
          %v798 = vadd.f32 %v792, %v793
          %v799 = vadd.f32 %v798, %v794
          %v800 = vadd.f32 %v799, %v795
          %v801 = vadd.f32 %v800, %v796
          %v802 = vadd.f32 %v801, %v797
          %v803 = vrot.slane %v802, 4
          %v804 = vadd.f32 %v802, %v803
          %v805 = vrot.slane %v804, 2
          %v806 = vadd.f32 %v804, %v805
          %v807 = vrot.slane %v806, 1
          %v808 = vadd.f32 %v806, %v807
          %v809 = vadd.f32 %v791, %v808
          %810 = vst [vmem:[%s279] sm:$0x1] %v809
        $region48: #{tpu_custom_call.1} parent=27 // pred_fallthru
          _
        %s811 = sand.u32 %s95, 1
        %s812 = scalar_lea.sflag [#allocation4], %s811
        %s813 = sand.u32 %s95, 1
        %s814 = scalar_lea.vmem [#allocation7], %s813
        %s815 = sand.u32 %s26, 1
        %s816 = scalar_lea.sflag [#allocation9], %s815
        %s817 = sand.u32 %s121, 1
        %s818 = scalar_lea.vmem [#allocation8], %s817
        %s819 = sand.u32 %s26, 1
        %s820 = scalar_lea.sflag [#allocation9], %s819
        %s821 = sand.u32 %s147, 1
        %s822 = scalar_lea.vmem [#allocation10], %s821
        // Predicated region
        $region49: #{tpu_custom_call.1} parent=27 // pred_check
          %p823 = pneg %p105
        $region50: #{tpu_custom_call.1} parent=27 // pred_check_branch
          %825 = sbr.rel (%p823) target = $region52
        $region51: #{tpu_custom_call.1} parent=27 // pred_region
          %s827 = ssub.s32 16, 16
          %828 = vsyncadd %s812, %s827
          %s829 = smul.addr %s30, 16
          %s830 = scalar_lea.hbm %s2, %s829
          %s832 = sshll.u32 %s814, 4
          %s833 = int_to_ptr.vmem [resolvable:$true] %s832
          %835 = dma.vmem_to_hbm [thread:$0]  %s833, 16, %s830, %s812
        $region52: #{tpu_custom_call.1} parent=27 // pred_fallthru
          _
        // Predicated region
        $region53: #{tpu_custom_call.1} parent=27 // pred_check
          %p836 = pneg %p131
        $region54: #{tpu_custom_call.1} parent=27 // pred_check_branch
          %838 = sbr.rel (%p836) target = $region56
        $region55: #{tpu_custom_call.1} parent=27 // pred_region
          %s840 = ssub.s32 16, 16
          %841 = vsyncadd %s816, %s840
          %s842 = smul.addr %s30, 16
          %s843 = scalar_lea.hbm %s3, %s842
          %s845 = sshll.u32 %s818, 4
          %s846 = int_to_ptr.vmem [resolvable:$true] %s845
          %848 = dma.vmem_to_hbm [thread:$0]  %s846, 16, %s843, %s816
        $region56: #{tpu_custom_call.1} parent=27 // pred_fallthru
          _
        // Predicated region
        $region57: #{tpu_custom_call.1} parent=27 // pred_check
          %p849 = pneg %p157
        $region58: #{tpu_custom_call.1} parent=27 // pred_check_branch
          %851 = sbr.rel (%p849) target = $region60
        $region59: #{tpu_custom_call.1} parent=27 // pred_region
          %s853 = ssub.s32 16, 16
          %854 = vsyncadd %s820, %s853
          %s855 = smul.addr %s30, 16
          %s856 = scalar_lea.hbm %s4, %s855
          %s858 = sshll.u32 %s822, 4
          %s859 = int_to_ptr.vmem [resolvable:$true] %s858
          %861 = dma.vmem_to_hbm [thread:$0]  %s859, 16, %s856, %s820
        $region60: #{tpu_custom_call.1} parent=27 // pred_fallthru
          _
      $region28: #{tpu_custom_call.1} parent=5 // pred_fallthru
        _
      %p862 = scmp.le.s32.totalorder 2, %s21
      // Predicated region
      $region61: #{tpu_custom_call.1} parent=5 // pred_check
        %p863 = pneg %p862
      $region62: #{tpu_custom_call.1} parent=5 // pred_check_branch
        %865 = sbr.rel (%p863) target = $region64
      $region63: #{tpu_custom_call.1} parent=5 // pred_region
        %s866 = ssub.s32 %s21, 2
        // Predicated region
        $region65: #{tpu_custom_call.1} parent=63 // pred_check
          %p867 = pneg %p111
        $region66: #{tpu_custom_call.1} parent=63 // pred_check_branch
          %869 = sbr.rel (%p867) target = $region68
        $region67: #{tpu_custom_call.1} parent=63 // pred_region
          %s870 = sand.u32 %s96, 1
          %s871 = scalar_lea.sflag [#allocation4], %s870
          %s872 = sand.u32 %s96, 1
          %s873 = scalar_lea.vmem [#allocation7], %s872
          %874 = dma.done %s871, 16
        $region68: #{tpu_custom_call.1} parent=63 // pred_fallthru
          _
        // Predicated region
        $region69: #{tpu_custom_call.1} parent=63 // pred_check
          %p875 = pneg %p137
        $region70: #{tpu_custom_call.1} parent=63 // pred_check_branch
          %877 = sbr.rel (%p875) target = $region72
        $region71: #{tpu_custom_call.1} parent=63 // pred_region
          %s878 = sand.u32 %s27, 1
          %s879 = scalar_lea.sflag [#allocation9], %s878
          %s880 = sand.u32 %s122, 1
          %s881 = scalar_lea.vmem [#allocation8], %s880
          %882 = dma.done %s879, 16
        $region72: #{tpu_custom_call.1} parent=63 // pred_fallthru
          _
        // Predicated region
        $region73: #{tpu_custom_call.1} parent=63 // pred_check
          %p883 = pneg %p163
        $region74: #{tpu_custom_call.1} parent=63 // pred_check_branch
          %885 = sbr.rel (%p883) target = $region76
        $region75: #{tpu_custom_call.1} parent=63 // pred_region
          %s886 = sand.u32 %s27, 1
          %s887 = scalar_lea.sflag [#allocation9], %s886
          %s888 = sand.u32 %s148, 1
          %s889 = scalar_lea.vmem [#allocation10], %s888
          %890 = dma.done %s887, 16
        $region76: #{tpu_custom_call.1} parent=63 // pred_fallthru
          _
      $region64: #{tpu_custom_call.1} parent=5 // pred_fallthru
        _
    $region6: #{tpu_custom_call.1} parent=1 // loop_footer
      %s25 = sadd.s32 1, %s21
    $region7: #{tpu_custom_call.1} parent=1 // loop_footer_branch
      %20 = sbr.rel target = $region3
    $region8: #{tpu_custom_call.1} parent=1 // loop_exit
      _
    %891 = vsyncpa [#allocation3], 1
    %s892 = scalar_lea.sflag [#allocation3], 1
    %893 = vsyncpa %s892, 1
    %894 = vsyncpa [#allocation6], 1
    %895 = vsyncpa [#allocation4], 1
    %s896 = scalar_lea.sflag [#allocation4], 1
    %897 = vsyncpa %s896, 1
    %898 = vsyncpa [#allocation9], 1
    %s899 = scalar_lea.sflag [#allocation9], 1
    %900 = vsyncpa %s899, 1

</llo_original>
